<compile_context>
chip_gen: v7x
topology: tpu7x:2x2x1
jax: 0.10.0
libtpu: 0.0.40
codegen_flags: <defaults>
</compile_context>

<pallas_src>
import functools

import jax
import jax.numpy as jnp
from jax.experimental import pallas as pl
from jax.experimental.pallas import tpu as pltpu

INPUT_DIM = 16
OUTPUT_DIM = 8
BATCH = 8
NUM_CONTROL_POINTS = 5
DEGREE = 3


def _round_up(n, m):
    return ((n + m - 1) // m) * m


def _knots(num_control_points, degree):
    """Uniform extended knot vector over [-1, 1]; returns (knots, spacing h)."""
    grid_size = num_control_points - degree
    h = 2.0 / grid_size
    t = [(-1.0 + (m - degree) * h) for m in range(num_control_points + degree + 1)]
    return t, h


def _bspline_basis_folded(x, num_control_points, degree):
    """Uniform-knot Cox-de Boor basis, restructured for low vreg pressure.

    * Degree-0 indicators are differences of shared step functions; the step at
      knot K (the right domain edge, x == +1) is strict (>), which closes the
      last in-domain span on the right and opens the next span on the left, so
      x == +1 is counted exactly once (no drop / no double count).
    * Recursion uses t[m+d]-t[m] == d*h and dx[m+d+1] == dx[m] - (d+1)*h:
          n_d[m] = (x - t[m]) * (n[m] - n[m+1]) / (d*h) + ((d+1)/d) * n[m+1]
      so only x itself has to stay live (no hoisted dx list).
    """
    K = num_control_points
    t, h = _knots(K, degree)
    f32 = jnp.float32

    steps = []
    for m in range(len(t)):
        if m == K:
            steps.append((x > t[m]).astype(f32))
        else:
            steps.append((x >= t[m]).astype(f32))
    n = [steps[m] - steps[m + 1] for m in range(len(t) - 1)]

    for d in range(1, degree + 1):
        inv = 1.0 / (d * h)
        c = (d + 1.0) / d
        n = [
            (x - t[m]) * ((n[m] - n[m + 1]) * inv) + c * n[m + 1]
            for m in range(len(n) - 1)
        ]
    return n  # K arrays, same shape as x


def _bspline_basis_ref(x, num_control_points, degree):
    """Naive Cox-de Boor recursion (pure-JAX reference, same boundary rule)."""
    t, _ = _knots(num_control_points, degree)
    K = num_control_points
    n = []
    for m in range(len(t) - 1):
        if m == K - 1:
            ind = (x >= t[m]) & (x <= t[m + 1])
        elif m == K:
            ind = (x > t[m]) & (x < t[m + 1])
        else:
            ind = (x >= t[m]) & (x < t[m + 1])
        n.append(ind.astype(jnp.float32))
    for d in range(1, degree + 1):
        nn = []
        for m in range(len(n) - 1):
            left = (x - t[m]) / (t[m + d] - t[m]) * n[m]
            right = (t[m + d + 1] - x) / (t[m + d + 1] - t[m + 1]) * n[m + 1]
            nn.append(left + right)
        n = nn
    return n


def kan_layer_kernel(x_ref, w_ref, o_ref, basis_ref, *,
                     num_control_points, degree, chunk):
    # x_ref:     (bt, D_in)       natural batch-major layout (no wrapper transpose)
    # w_ref:     (D_out, K*D_in)  importance-folded weights, resident across grid
    # o_ref:     (bt, D_out)
    # basis_ref: (K*D_in, chunk)  VMEM scratch: the MXU operand is built in place
    bt, d_in = x_ref.shape
    K = num_control_points
    w = w_ref[...]  # tiny, hoisted out of the chunk loop

    n_chunks = (bt + chunk - 1) // chunk
    last_start = bt - chunk

    def body(c, carry):
        # The last (possibly partial) chunk is shifted back so every pl.ds stays
        # in-bounds; overlapped rows are simply recomputed/rewritten (idempotent).
        start = pl.multiple_of(jnp.minimum(c * chunk, last_start), 8)
        rows = pl.ds(start, chunk)

        # (chunk, D_in) -> (D_in, chunk): lane-dense for the VPU basis math.
        xt = jnp.transpose(x_ref[rows, :]).astype(jnp.float32)
        basis = _bspline_basis_folded(xt, K, degree)          # K x (D_in, chunk)

        # Build the fused MXU operand in place (no concatenate temporary).
        for k in range(K):
            basis_ref[pl.ds(k * d_in, d_in), :] = basis[k]

        out_c = jnp.dot(w, basis_ref[...],                    # (D_out, chunk), lane-dense
                        preferred_element_type=jnp.float32,
                        precision=jax.lax.Precision.HIGHEST)
        o_ref[rows, :] = jnp.transpose(out_c).astype(o_ref.dtype)
        return carry

    jax.lax.fori_loop(0, n_chunks, body, None)


def kan_layer_forward(x, coef, importance, *,
                      num_control_points=NUM_CONTROL_POINTS, degree=DEGREE,
                      batch_tile=4096, lane_chunk=128):
    """KANLayer.forward.  x: (B, D_in_x); coef: (D_in, D_out, K); importance: (D_in, D_out)."""
    x = x.astype(jnp.float32)
    B = x.shape[0]
    K = num_control_points
    D_out = coef.shape[1]
    # The PyTorch forward only uses the first min(input_dim, x.shape[1]) columns.
    D_in = min(coef.shape[0], x.shape[1])
    x = x[:, :D_in]
    coef = coef[:D_in].astype(jnp.float32)
    importance = importance[:D_in].astype(jnp.float32)

    # Fold activation_importance into the coefficients and flatten the (k, i)
    # contraction axis so the kernel does ONE resident-weight MXU dot:
    #   w_t[j, k*D_in + i] = importance[i, j] * coef[i, j, k]
    w = importance[:, :, None] * coef                              # (D_in, D_out, K)
    w_t = jnp.transpose(w, (1, 2, 0)).reshape(D_out, K * D_in)     # (D_out, K*D_in)

    # Keep x in its natural (B, D_in) HBM layout (no big wrapper transpose/pad);
    # only pad the batch to a sublane multiple when B % 8 != 0.
    B_eff = _round_up(B, 8)
    if B_eff != B:
        x = jnp.pad(x, ((0, B_eff - B), (0, 0)))

    batch_tile = _round_up(max(batch_tile, 8), 8)
    lane_chunk = _round_up(max(lane_chunk, 8), 8)
    bt = min(batch_tile, B_eff)              # batch rows per grid step
    chunk = min(lane_chunk, bt)              # lanes per in-kernel sub-chunk
    if bt == B_eff and B_eff >= 4 * chunk:
        # Prefer >= 2 grid steps so v7x can shard the batch across both
        # TensorCores and the HBM<->VMEM pipeline has something to overlap.
        bt = _round_up(pl.cdiv(B_eff, 2), chunk)
    grid = (pl.cdiv(B_eff, bt),)

    kernel = functools.partial(kan_layer_kernel, num_control_points=K,
                               degree=degree, chunk=chunk)
    cost = pl.CostEstimate(
        flops=int(B_eff) * (2 * D_out * K * D_in + 140 * D_in),
        transcendentals=0,
        bytes_accessed=int(B_eff) * 4 * (D_in + D_out) + 4 * D_out * K * D_in,
    )

    out = pl.pallas_call(
        kernel,
        out_shape=jax.ShapeDtypeStruct((B_eff, D_out), jnp.float32),
        grid=grid,
        in_specs=[
            pl.BlockSpec((bt, D_in), lambda b: (b, 0)),            # natural layout x
            pl.BlockSpec((D_out, K * D_in), lambda b: (0, 0)),     # resident weights
        ],
        out_specs=pl.BlockSpec((bt, D_out), lambda b: (b, 0)),
        scratch_shapes=[pltpu.VMEM((K * D_in, chunk), jnp.float32)],
        compiler_params=pltpu.CompilerParams(
            dimension_semantics=("parallel",),
        ),
        cost_estimate=cost,
    )(x, w_t)
    return out if B_eff == B else out[:B]


def kan_layer_reference(x, coef, importance, *,
                        num_control_points=NUM_CONTROL_POINTS, degree=DEGREE):
    """Pure-JAX reference mirroring the PyTorch double loop (vectorized)."""
    d_in = min(coef.shape[0], x.shape[1])
    x = x[:, :d_in].astype(jnp.float32)
    basis = jnp.stack(
        _bspline_basis_ref(x, num_control_points, degree), axis=-1
    )  # (B, D_in, K)
    spline = jnp.einsum("bik,ijk->bij", basis, coef[:d_in].astype(jnp.float32),
                        precision=jax.lax.Precision.HIGHEST)
    return jnp.einsum("bij,ij->bj", spline, importance[:d_in].astype(jnp.float32),
                      precision=jax.lax.Precision.HIGHEST)


if __name__ == "__main__":
    key = jax.random.PRNGKey(0)
    kx, kc, ki, kx2, kx3 = jax.random.split(key, 5)

    # Shapes per KANLayer.__init__: one B-spline per (input_dim * output_dim)
    # pair with `num_control_points` coefficients; activation_importance is a
    # learnable (input_dim, output_dim) parameter (perturbed from ones here to
    # exercise the importance-folding path).  in_scores / out_scores are not
    # used in forward().
    x = jax.random.normal(kx, (BATCH, INPUT_DIM), dtype=jnp.float32)
    coef = 0.1 * jax.random.normal(
        kc, (INPUT_DIM, OUTPUT_DIM, NUM_CONTROL_POINTS), dtype=jnp.float32
    )
    importance = 1.0 + 0.1 * jax.random.normal(
        ki, (INPUT_DIM, OUTPUT_DIM), dtype=jnp.float32
    )

    out = jax.block_until_ready(kan_layer_forward(x, coef, importance))
    ref = jax.block_until_ready(kan_layer_reference(x, coef, importance))
    assert out.shape == (BATCH, OUTPUT_DIM), out.shape
    assert jnp.allclose(out, ref, atol=5e-5, rtol=5e-5), float(jnp.abs(out - ref).max())

    # B=1000: 2-step "parallel" grid (512 + partial 488 rows), shifted last
    # lane-chunk, masked partial-block writeback.
    xb = jax.random.normal(kx2, (1000, INPUT_DIM), dtype=jnp.float32)
    outb = jax.block_until_ready(kan_layer_forward(xb, coef, importance))
    refb = jax.block_until_ready(kan_layer_reference(xb, coef, importance))
    assert outb.shape == (1000, OUTPUT_DIM), outb.shape
    assert jnp.allclose(outb, refb, atol=5e-5, rtol=5e-5), float(jnp.abs(outb - refb).max())

    # B=8192: two full 4096-row grid steps, 32 lane-chunks each.
    xc = jax.random.normal(kx3, (8192, INPUT_DIM), dtype=jnp.float32)
    outc = jax.block_until_ready(kan_layer_forward(xc, coef, importance))
    refc = jax.block_until_ready(kan_layer_reference(xc, coef, importance))
    assert outc.shape == (8192, OUTPUT_DIM), outc.shape
    assert jnp.allclose(outc, refc, atol=5e-5, rtol=5e-5), float(jnp.abs(outc - refc).max())

    print("KERNEL_OK")
</pallas_src>

<mosaic_0001>
module attributes {stable_mosaic.version = 11 : i64} {
  func.func @kan_layer_kernel(%arg0: i32, %arg1: memref<8x16xf32, #tpu.memory_space<vmem>>, %arg2: memref<8x80xf32, #tpu.memory_space<vmem>>, %arg3: memref<8x8xf32, #tpu.memory_space<vmem>>, %arg4: memref<80x8xf32, #tpu.memory_space<vmem>>) attributes {dimension_semantics = [#tpu.dimension_semantics<parallel>], iteration_bounds = array<i64: 1>, scalar_prefetch = 0 : i64, scratch_operands = 1 : i64, tpu.core_type = #tpu.core_type<tc>, window_params = [{transform_indices = @transform_0, window_bounds = array<i64: 8, 16>}, {pipeline_mode = #tpu.pipeline_mode<synchronous>, transform_indices = @transform_1, window_bounds = array<i64: 8, 80>}, {transform_indices = @transform_2, window_bounds = array<i64: 8, 8>}]} {
    %c0 = arith.constant 0 : index
    %c0_0 = arith.constant 0 : index
    %0 = vector.load %arg2[%c0, %c0_0] : memref<8x80xf32, #tpu.memory_space<vmem>>, vector<8x80xf32>
    %c0_i32 = arith.constant 0 : i32
    %c8_i32 = arith.constant 8 : i32
    %1 = arith.muli %c0_i32, %c8_i32 : i32
    %c0_i32_1 = arith.constant 0 : i32
    %2 = arith.minsi %1, %c0_i32_1 : i32
    %3 = tpu.assume_multiple %2, 8 : i32
    %4 = arith.index_cast %3 : i32 to index
    %c0_2 = arith.constant 0 : index
    %5 = vector.load %arg1[%4, %c0_2] : memref<8x16xf32, #tpu.memory_space<vmem>>, vector<8x16xf32>
    %6 = tpu.transpose %5, [1, 0] : vector<8x16xf32> -> vector<16x8xf32>
    %cst = arith.constant -4.000000e+00 : f32
    %7 = vector.broadcast %cst : f32 to vector<16x8xf32>
    %8 = arith.cmpf oge, %6, %7 : vector<16x8xf32>
    %9 = arith.extui %8 : vector<16x8xi1> to vector<16x8xi32>
    %10 = arith.sitofp %9 : vector<16x8xi32> to vector<16x8xf32>
    %cst_3 = arith.constant -3.000000e+00 : f32
    %11 = vector.broadcast %cst_3 : f32 to vector<16x8xf32>
    %12 = arith.cmpf oge, %6, %11 : vector<16x8xf32>
    %13 = arith.extui %12 : vector<16x8xi1> to vector<16x8xi32>
    %14 = arith.sitofp %13 : vector<16x8xi32> to vector<16x8xf32>
    %cst_4 = arith.constant -2.000000e+00 : f32
    %15 = vector.broadcast %cst_4 : f32 to vector<16x8xf32>
    %16 = arith.cmpf oge, %6, %15 : vector<16x8xf32>
    %17 = arith.extui %16 : vector<16x8xi1> to vector<16x8xi32>
    %18 = arith.sitofp %17 : vector<16x8xi32> to vector<16x8xf32>
    %cst_5 = arith.constant -1.000000e+00 : f32
    %19 = vector.broadcast %cst_5 : f32 to vector<16x8xf32>
    %20 = arith.cmpf oge, %6, %19 : vector<16x8xf32>
    %21 = arith.extui %20 : vector<16x8xi1> to vector<16x8xi32>
    %22 = arith.sitofp %21 : vector<16x8xi32> to vector<16x8xf32>
    %cst_6 = arith.constant 0.000000e+00 : f32
    %23 = vector.broadcast %cst_6 : f32 to vector<16x8xf32>
    %24 = arith.cmpf oge, %6, %23 : vector<16x8xf32>
    %25 = arith.extui %24 : vector<16x8xi1> to vector<16x8xi32>
    %26 = arith.sitofp %25 : vector<16x8xi32> to vector<16x8xf32>
    %cst_7 = arith.constant 1.000000e+00 : f32
    %27 = vector.broadcast %cst_7 : f32 to vector<16x8xf32>
    %28 = arith.cmpf ogt, %6, %27 : vector<16x8xf32>
    %29 = arith.extui %28 : vector<16x8xi1> to vector<16x8xi32>
    %30 = arith.sitofp %29 : vector<16x8xi32> to vector<16x8xf32>
    %cst_8 = arith.constant 2.000000e+00 : f32
    %31 = vector.broadcast %cst_8 : f32 to vector<16x8xf32>
    %32 = arith.cmpf oge, %6, %31 : vector<16x8xf32>
    %33 = arith.extui %32 : vector<16x8xi1> to vector<16x8xi32>
    %34 = arith.sitofp %33 : vector<16x8xi32> to vector<16x8xf32>
    %cst_9 = arith.constant 3.000000e+00 : f32
    %35 = vector.broadcast %cst_9 : f32 to vector<16x8xf32>
    %36 = arith.cmpf oge, %6, %35 : vector<16x8xf32>
    %37 = arith.extui %36 : vector<16x8xi1> to vector<16x8xi32>
    %38 = arith.sitofp %37 : vector<16x8xi32> to vector<16x8xf32>
    %cst_10 = arith.constant 4.000000e+00 : f32
    %39 = vector.broadcast %cst_10 : f32 to vector<16x8xf32>
    %40 = arith.cmpf oge, %6, %39 : vector<16x8xf32>
    %41 = arith.extui %40 : vector<16x8xi1> to vector<16x8xi32>
    %42 = arith.sitofp %41 : vector<16x8xi32> to vector<16x8xf32>
    %43 = arith.subf %10, %14 : vector<16x8xf32>
    %44 = arith.subf %14, %18 : vector<16x8xf32>
    %45 = arith.subf %18, %22 : vector<16x8xf32>
    %46 = arith.subf %22, %26 : vector<16x8xf32>
    %47 = arith.subf %26, %30 : vector<16x8xf32>
    %48 = arith.subf %30, %34 : vector<16x8xf32>
    %49 = arith.subf %34, %38 : vector<16x8xf32>
    %50 = arith.subf %38, %42 : vector<16x8xf32>
    %cst_11 = arith.constant -4.000000e+00 : f32
    %51 = vector.broadcast %cst_11 : f32 to vector<16x8xf32>
    %52 = arith.subf %6, %51 : vector<16x8xf32>
    %53 = arith.subf %43, %44 : vector<16x8xf32>
    %cst_12 = arith.constant 1.000000e+00 : f32
    %54 = vector.broadcast %cst_12 : f32 to vector<16x8xf32>
    %55 = arith.mulf %53, %54 : vector<16x8xf32>
    %56 = arith.mulf %52, %55 : vector<16x8xf32>
    %cst_13 = arith.constant 2.000000e+00 : f32
    %57 = vector.broadcast %cst_13 : f32 to vector<16x8xf32>
    %58 = arith.mulf %57, %44 : vector<16x8xf32>
    %59 = arith.addf %56, %58 : vector<16x8xf32>
    %cst_14 = arith.constant -3.000000e+00 : f32
    %60 = vector.broadcast %cst_14 : f32 to vector<16x8xf32>
    %61 = arith.subf %6, %60 : vector<16x8xf32>
    %62 = arith.subf %44, %45 : vector<16x8xf32>
    %cst_15 = arith.constant 1.000000e+00 : f32
    %63 = vector.broadcast %cst_15 : f32 to vector<16x8xf32>
    %64 = arith.mulf %62, %63 : vector<16x8xf32>
    %65 = arith.mulf %61, %64 : vector<16x8xf32>
    %cst_16 = arith.constant 2.000000e+00 : f32
    %66 = vector.broadcast %cst_16 : f32 to vector<16x8xf32>
    %67 = arith.mulf %66, %45 : vector<16x8xf32>
    %68 = arith.addf %65, %67 : vector<16x8xf32>
    %cst_17 = arith.constant -2.000000e+00 : f32
    %69 = vector.broadcast %cst_17 : f32 to vector<16x8xf32>
    %70 = arith.subf %6, %69 : vector<16x8xf32>
    %71 = arith.subf %45, %46 : vector<16x8xf32>
    %cst_18 = arith.constant 1.000000e+00 : f32
    %72 = vector.broadcast %cst_18 : f32 to vector<16x8xf32>
    %73 = arith.mulf %71, %72 : vector<16x8xf32>
    %74 = arith.mulf %70, %73 : vector<16x8xf32>
    %cst_19 = arith.constant 2.000000e+00 : f32
    %75 = vector.broadcast %cst_19 : f32 to vector<16x8xf32>
    %76 = arith.mulf %75, %46 : vector<16x8xf32>
    %77 = arith.addf %74, %76 : vector<16x8xf32>
    %cst_20 = arith.constant -1.000000e+00 : f32
    %78 = vector.broadcast %cst_20 : f32 to vector<16x8xf32>
    %79 = arith.subf %6, %78 : vector<16x8xf32>
    %80 = arith.subf %46, %47 : vector<16x8xf32>
    %cst_21 = arith.constant 1.000000e+00 : f32
    %81 = vector.broadcast %cst_21 : f32 to vector<16x8xf32>
    %82 = arith.mulf %80, %81 : vector<16x8xf32>
    %83 = arith.mulf %79, %82 : vector<16x8xf32>
    %cst_22 = arith.constant 2.000000e+00 : f32
    %84 = vector.broadcast %cst_22 : f32 to vector<16x8xf32>
    %85 = arith.mulf %84, %47 : vector<16x8xf32>
    %86 = arith.addf %83, %85 : vector<16x8xf32>
    %cst_23 = arith.constant 0.000000e+00 : f32
    %87 = vector.broadcast %cst_23 : f32 to vector<16x8xf32>
    %88 = arith.subf %6, %87 : vector<16x8xf32>
    %89 = arith.subf %47, %48 : vector<16x8xf32>
    %cst_24 = arith.constant 1.000000e+00 : f32
    %90 = vector.broadcast %cst_24 : f32 to vector<16x8xf32>
    %91 = arith.mulf %89, %90 : vector<16x8xf32>
    %92 = arith.mulf %88, %91 : vector<16x8xf32>
    %cst_25 = arith.constant 2.000000e+00 : f32
    %93 = vector.broadcast %cst_25 : f32 to vector<16x8xf32>
    %94 = arith.mulf %93, %48 : vector<16x8xf32>
    %95 = arith.addf %92, %94 : vector<16x8xf32>
    %cst_26 = arith.constant 1.000000e+00 : f32
    %96 = vector.broadcast %cst_26 : f32 to vector<16x8xf32>
    %97 = arith.subf %6, %96 : vector<16x8xf32>
    %98 = arith.subf %48, %49 : vector<16x8xf32>
    %cst_27 = arith.constant 1.000000e+00 : f32
    %99 = vector.broadcast %cst_27 : f32 to vector<16x8xf32>
    %100 = arith.mulf %98, %99 : vector<16x8xf32>
    %101 = arith.mulf %97, %100 : vector<16x8xf32>
    %cst_28 = arith.constant 2.000000e+00 : f32
    %102 = vector.broadcast %cst_28 : f32 to vector<16x8xf32>
    %103 = arith.mulf %102, %49 : vector<16x8xf32>
    %104 = arith.addf %101, %103 : vector<16x8xf32>
    %cst_29 = arith.constant 2.000000e+00 : f32
    %105 = vector.broadcast %cst_29 : f32 to vector<16x8xf32>
    %106 = arith.subf %6, %105 : vector<16x8xf32>
    %107 = arith.subf %49, %50 : vector<16x8xf32>
    %cst_30 = arith.constant 1.000000e+00 : f32
    %108 = vector.broadcast %cst_30 : f32 to vector<16x8xf32>
    %109 = arith.mulf %107, %108 : vector<16x8xf32>
    %110 = arith.mulf %106, %109 : vector<16x8xf32>
    %cst_31 = arith.constant 2.000000e+00 : f32
    %111 = vector.broadcast %cst_31 : f32 to vector<16x8xf32>
    %112 = arith.mulf %111, %50 : vector<16x8xf32>
    %113 = arith.addf %110, %112 : vector<16x8xf32>
    %cst_32 = arith.constant -4.000000e+00 : f32
    %114 = vector.broadcast %cst_32 : f32 to vector<16x8xf32>
    %115 = arith.subf %6, %114 : vector<16x8xf32>
    %116 = arith.subf %59, %68 : vector<16x8xf32>
    %cst_33 = arith.constant 5.000000e-01 : f32
    %117 = vector.broadcast %cst_33 : f32 to vector<16x8xf32>
    %118 = arith.mulf %116, %117 : vector<16x8xf32>
    %119 = arith.mulf %115, %118 : vector<16x8xf32>
    %cst_34 = arith.constant 1.500000e+00 : f32
    %120 = vector.broadcast %cst_34 : f32 to vector<16x8xf32>
    %121 = arith.mulf %120, %68 : vector<16x8xf32>
    %122 = arith.addf %119, %121 : vector<16x8xf32>
    %cst_35 = arith.constant -3.000000e+00 : f32
    %123 = vector.broadcast %cst_35 : f32 to vector<16x8xf32>
    %124 = arith.subf %6, %123 : vector<16x8xf32>
    %125 = arith.subf %68, %77 : vector<16x8xf32>
    %cst_36 = arith.constant 5.000000e-01 : f32
    %126 = vector.broadcast %cst_36 : f32 to vector<16x8xf32>
    %127 = arith.mulf %125, %126 : vector<16x8xf32>
    %128 = arith.mulf %124, %127 : vector<16x8xf32>
    %cst_37 = arith.constant 1.500000e+00 : f32
    %129 = vector.broadcast %cst_37 : f32 to vector<16x8xf32>
    %130 = arith.mulf %129, %77 : vector<16x8xf32>
    %131 = arith.addf %128, %130 : vector<16x8xf32>
    %cst_38 = arith.constant -2.000000e+00 : f32
    %132 = vector.broadcast %cst_38 : f32 to vector<16x8xf32>
    %133 = arith.subf %6, %132 : vector<16x8xf32>
    %134 = arith.subf %77, %86 : vector<16x8xf32>
    %cst_39 = arith.constant 5.000000e-01 : f32
    %135 = vector.broadcast %cst_39 : f32 to vector<16x8xf32>
    %136 = arith.mulf %134, %135 : vector<16x8xf32>
    %137 = arith.mulf %133, %136 : vector<16x8xf32>
    %cst_40 = arith.constant 1.500000e+00 : f32
    %138 = vector.broadcast %cst_40 : f32 to vector<16x8xf32>
    %139 = arith.mulf %138, %86 : vector<16x8xf32>
    %140 = arith.addf %137, %139 : vector<16x8xf32>
    %cst_41 = arith.constant -1.000000e+00 : f32
    %141 = vector.broadcast %cst_41 : f32 to vector<16x8xf32>
    %142 = arith.subf %6, %141 : vector<16x8xf32>
    %143 = arith.subf %86, %95 : vector<16x8xf32>
    %cst_42 = arith.constant 5.000000e-01 : f32
    %144 = vector.broadcast %cst_42 : f32 to vector<16x8xf32>
    %145 = arith.mulf %143, %144 : vector<16x8xf32>
    %146 = arith.mulf %142, %145 : vector<16x8xf32>
    %cst_43 = arith.constant 1.500000e+00 : f32
    %147 = vector.broadcast %cst_43 : f32 to vector<16x8xf32>
    %148 = arith.mulf %147, %95 : vector<16x8xf32>
    %149 = arith.addf %146, %148 : vector<16x8xf32>
    %cst_44 = arith.constant 0.000000e+00 : f32
    %150 = vector.broadcast %cst_44 : f32 to vector<16x8xf32>
    %151 = arith.subf %6, %150 : vector<16x8xf32>
    %152 = arith.subf %95, %104 : vector<16x8xf32>
    %cst_45 = arith.constant 5.000000e-01 : f32
    %153 = vector.broadcast %cst_45 : f32 to vector<16x8xf32>
    %154 = arith.mulf %152, %153 : vector<16x8xf32>
    %155 = arith.mulf %151, %154 : vector<16x8xf32>
    %cst_46 = arith.constant 1.500000e+00 : f32
    %156 = vector.broadcast %cst_46 : f32 to vector<16x8xf32>
    %157 = arith.mulf %156, %104 : vector<16x8xf32>
    %158 = arith.addf %155, %157 : vector<16x8xf32>
    %cst_47 = arith.constant 1.000000e+00 : f32
    %159 = vector.broadcast %cst_47 : f32 to vector<16x8xf32>
    %160 = arith.subf %6, %159 : vector<16x8xf32>
    %161 = arith.subf %104, %113 : vector<16x8xf32>
    %cst_48 = arith.constant 5.000000e-01 : f32
    %162 = vector.broadcast %cst_48 : f32 to vector<16x8xf32>
    %163 = arith.mulf %161, %162 : vector<16x8xf32>
    %164 = arith.mulf %160, %163 : vector<16x8xf32>
    %cst_49 = arith.constant 1.500000e+00 : f32
    %165 = vector.broadcast %cst_49 : f32 to vector<16x8xf32>
    %166 = arith.mulf %165, %113 : vector<16x8xf32>
    %167 = arith.addf %164, %166 : vector<16x8xf32>
    %cst_50 = arith.constant -4.000000e+00 : f32
    %168 = vector.broadcast %cst_50 : f32 to vector<16x8xf32>
    %169 = arith.subf %6, %168 : vector<16x8xf32>
    %170 = arith.subf %122, %131 : vector<16x8xf32>
    %cst_51 = arith.constant 0.333333343 : f32
    %171 = vector.broadcast %cst_51 : f32 to vector<16x8xf32>
    %172 = arith.mulf %170, %171 : vector<16x8xf32>
    %173 = arith.mulf %169, %172 : vector<16x8xf32>
    %cst_52 = arith.constant 1.33333337 : f32
    %174 = vector.broadcast %cst_52 : f32 to vector<16x8xf32>
    %175 = arith.mulf %174, %131 : vector<16x8xf32>
    %176 = arith.addf %173, %175 : vector<16x8xf32>
    %cst_53 = arith.constant -3.000000e+00 : f32
    %177 = vector.broadcast %cst_53 : f32 to vector<16x8xf32>
    %178 = arith.subf %6, %177 : vector<16x8xf32>
    %179 = arith.subf %131, %140 : vector<16x8xf32>
    %cst_54 = arith.constant 0.333333343 : f32
    %180 = vector.broadcast %cst_54 : f32 to vector<16x8xf32>
    %181 = arith.mulf %179, %180 : vector<16x8xf32>
    %182 = arith.mulf %178, %181 : vector<16x8xf32>
    %cst_55 = arith.constant 1.33333337 : f32
    %183 = vector.broadcast %cst_55 : f32 to vector<16x8xf32>
    %184 = arith.mulf %183, %140 : vector<16x8xf32>
    %185 = arith.addf %182, %184 : vector<16x8xf32>
    %cst_56 = arith.constant -2.000000e+00 : f32
    %186 = vector.broadcast %cst_56 : f32 to vector<16x8xf32>
    %187 = arith.subf %6, %186 : vector<16x8xf32>
    %188 = arith.subf %140, %149 : vector<16x8xf32>
    %cst_57 = arith.constant 0.333333343 : f32
    %189 = vector.broadcast %cst_57 : f32 to vector<16x8xf32>
    %190 = arith.mulf %188, %189 : vector<16x8xf32>
    %191 = arith.mulf %187, %190 : vector<16x8xf32>
    %cst_58 = arith.constant 1.33333337 : f32
    %192 = vector.broadcast %cst_58 : f32 to vector<16x8xf32>
    %193 = arith.mulf %192, %149 : vector<16x8xf32>
    %194 = arith.addf %191, %193 : vector<16x8xf32>
    %cst_59 = arith.constant -1.000000e+00 : f32
    %195 = vector.broadcast %cst_59 : f32 to vector<16x8xf32>
    %196 = arith.subf %6, %195 : vector<16x8xf32>
    %197 = arith.subf %149, %158 : vector<16x8xf32>
    %cst_60 = arith.constant 0.333333343 : f32
    %198 = vector.broadcast %cst_60 : f32 to vector<16x8xf32>
    %199 = arith.mulf %197, %198 : vector<16x8xf32>
    %200 = arith.mulf %196, %199 : vector<16x8xf32>
    %cst_61 = arith.constant 1.33333337 : f32
    %201 = vector.broadcast %cst_61 : f32 to vector<16x8xf32>
    %202 = arith.mulf %201, %158 : vector<16x8xf32>
    %203 = arith.addf %200, %202 : vector<16x8xf32>
    %cst_62 = arith.constant 0.000000e+00 : f32
    %204 = vector.broadcast %cst_62 : f32 to vector<16x8xf32>
    %205 = arith.subf %6, %204 : vector<16x8xf32>
    %206 = arith.subf %158, %167 : vector<16x8xf32>
    %cst_63 = arith.constant 0.333333343 : f32
    %207 = vector.broadcast %cst_63 : f32 to vector<16x8xf32>
    %208 = arith.mulf %206, %207 : vector<16x8xf32>
    %209 = arith.mulf %205, %208 : vector<16x8xf32>
    %cst_64 = arith.constant 1.33333337 : f32
    %210 = vector.broadcast %cst_64 : f32 to vector<16x8xf32>
    %211 = arith.mulf %210, %167 : vector<16x8xf32>
    %212 = arith.addf %209, %211 : vector<16x8xf32>
    %c0_65 = arith.constant 0 : index
    %c0_66 = arith.constant 0 : index
    %213 = vector.load %arg4[%c0_65, %c0_66] : memref<80x8xf32, #tpu.memory_space<vmem>>, vector<16x8xf32>
    tpu.vector_store %arg4[%c0_65, %c0_66], %176 {strides = array<i32>} : memref<80x8xf32, #tpu.memory_space<vmem>>, vector<16x8xf32>,
    %c16 = arith.constant 16 : index
    %c0_67 = arith.constant 0 : index
    %214 = vector.load %arg4[%c16, %c0_67] : memref<80x8xf32, #tpu.memory_space<vmem>>, vector<16x8xf32>
    tpu.vector_store %arg4[%c16, %c0_67], %185 {strides = array<i32>} : memref<80x8xf32, #tpu.memory_space<vmem>>, vector<16x8xf32>,
    %c32 = arith.constant 32 : index
    %c0_68 = arith.constant 0 : index
    %215 = vector.load %arg4[%c32, %c0_68] : memref<80x8xf32, #tpu.memory_space<vmem>>, vector<16x8xf32>
    tpu.vector_store %arg4[%c32, %c0_68], %194 {strides = array<i32>} : memref<80x8xf32, #tpu.memory_space<vmem>>, vector<16x8xf32>,
    %c48 = arith.constant 48 : index
    %c0_69 = arith.constant 0 : index
    %216 = vector.load %arg4[%c48, %c0_69] : memref<80x8xf32, #tpu.memory_space<vmem>>, vector<16x8xf32>
    tpu.vector_store %arg4[%c48, %c0_69], %203 {strides = array<i32>} : memref<80x8xf32, #tpu.memory_space<vmem>>, vector<16x8xf32>,
    %c64 = arith.constant 64 : index
    %c0_70 = arith.constant 0 : index
    %217 = vector.load %arg4[%c64, %c0_70] : memref<80x8xf32, #tpu.memory_space<vmem>>, vector<16x8xf32>
    tpu.vector_store %arg4[%c64, %c0_70], %212 {strides = array<i32>} : memref<80x8xf32, #tpu.memory_space<vmem>>, vector<16x8xf32>,
    %c0_71 = arith.constant 0 : index
    %c0_72 = arith.constant 0 : index
    %218 = vector.load %arg4[%c0_71, %c0_72] : memref<80x8xf32, #tpu.memory_space<vmem>>, vector<80x8xf32>
    %cst_73 = arith.constant dense<0.000000e+00> : vector<8x8xf32>
    %219 = tpu.matmul %0, %218, %cst_73 {dimension_numbers = #tpu.dot_dimension_numbers<[1], [0], [0], [1], [0, 0, 1, 1], [], []>, precision = #tpu.contract_precision<fp32>} : vector<8x80xf32>, vector<80x8xf32>, vector<8x8xf32> -> vector<8x8xf32>
    %220 = tpu.transpose %219, [1, 0] : vector<8x8xf32> -> vector<8x8xf32>
    %221 = arith.index_cast %3 : i32 to index
    %c0_74 = arith.constant 0 : index
    %222 = vector.load %arg3[%221, %c0_74] : memref<8x8xf32, #tpu.memory_space<vmem>>, vector<8x8xf32>
    tpu.vector_store %arg3[%221, %c0_74], %220 {strides = array<i32>} : memref<8x8xf32, #tpu.memory_space<vmem>>, vector<8x8xf32>,
    %c1_i32 = arith.constant 1 : i32
    return
  }
  func.func @transform_0(%arg0: i32) -> (i32, i32) {
    %c0_i32 = arith.constant 0 : i32
    %c0_i32_0 = arith.constant 0 : i32
    return %arg0, %c0_i32 : i32, i32
  }
  func.func @transform_1(%arg0: i32) -> (i32, i32) {
    %c0_i32 = arith.constant 0 : i32
    %c0_i32_0 = arith.constant 0 : i32
    %c0_i32_1 = arith.constant 0 : i32
    return %c0_i32, %c0_i32_0 : i32, i32
  }
  func.func @transform_2(%arg0: i32) -> (i32, i32) {
    %c0_i32 = arith.constant 0 : i32
    %c0_i32_0 = arith.constant 0 : i32
    return %arg0, %c0_i32 : i32, i32
  }
}

</mosaic_0001>

<llo_original>
// kernel: tpu_custom_call.1
$region0: #{tpu_custom_call.1}
  #allocation0 [shape = 'u32[]', space=smem, size = 0x4, offset = 0x4, fixed_abs, tag = 'smem constant byte address 0x4 - core index']
  #allocation1 [shape = 'u32[144,128]{1,0:T(1,128)}', space=vmem, size = 0x12000, scoped, tag = 'internal scratch']
  #allocation2 [shape = 'f32[80,8]{1,0:T(8,128)}', space=vmem, size = 0xa000, scoped, tag = 'scratch operand']
  %s0 = inlined_call_operand.hbm [shape: f32[8,16], index: 0, kind: input, shape index: {}]
  %s1 = inlined_call_operand.hbm [shape: f32[8,80], index: 1, kind: input, shape index: {}]
  %s2 = inlined_call_operand.hbm [shape: f32[8,8], index: 2, kind: output, shape index: {}]
  %s3 = sld [smem:[#allocation0]]
  $region26: #{tpu_custom_call.1} parent=0
    _
  %s5 = ssub.s32 1, %s3
  %s6 = scalar_select 0, %s5, %s3
  $region1: #{tpu_custom_call.1} parent=0
    #allocation3 [shape = 'u8[4096]{0}', space=vmem, size = 0x1000, scoped, tag = 'input window, operand 0, single buffered']
    #allocation4 [shape = 's32[1]{0}', space=sflag, size = 0x4, scoped, tag = 'scoped memory for tpu_custom_call.1']
    #allocation5 [shape = 's32[1]{0}', space=sflag, size = 0x4, scoped, tag = 'scoped memory for tpu_custom_call.1']
    #allocation6 [shape = 'u8[4096]{0}', space=vmem, size = 0x1000, scoped, tag = 'input window, operand 1, single buffered']
    #allocation7 [shape = 's32[1]{0}', space=sflag, size = 0x4, scoped, tag = 'scoped memory for tpu_custom_call.1']
    #allocation8 [shape = 'u8[4096]{0}', space=vmem, size = 0x1000, scoped, tag = 'output window, operand 0, single buffered']
    %7 = vsyncpa [#allocation4], 0
    %8 = vsyncpa [#allocation7], 0
    %9 = vsyncpa [#allocation5], 0
    // Predicated region
    $region2: #{tpu_custom_call.1} parent=1 // pred_check
      _
    $region3: #{tpu_custom_call.1} parent=1 // pred_check_branch
      %11 = sbr.rel (0) target = $region5
    $region4: #{tpu_custom_call.1} parent=1 // pred_region
      %s13 = ssub.s32 128, 128
      %14 = vsyncadd [#allocation4], %s13
      %s16 = sshll.u32 [#allocation3], 4
      %s17 = int_to_ptr.vmem [resolvable:$true] %s16
      %19 = dma.hbm_to_vmem [thread:$0]  %s0, 128, %s17, [#allocation4]
    $region5: #{tpu_custom_call.1} parent=1 // pred_fallthru
      _
    // Predicated region
    $region6: #{tpu_custom_call.1} parent=1 // pred_check
      _
    $region7: #{tpu_custom_call.1} parent=1 // pred_check_branch
      %21 = sbr.rel (0) target = $region9
    $region8: #{tpu_custom_call.1} parent=1 // pred_region
      %s23 = ssub.s32 128, 128
      %24 = vsyncadd [#allocation7], %s23
      %s26 = sshll.u32 [#allocation6], 4
      %s27 = int_to_ptr.vmem [resolvable:$true] %s26
      %29 = dma.hbm_to_vmem [thread:$0]  %s1, 128, %s27, [#allocation7]
    $region9: #{tpu_custom_call.1} parent=1 // pred_fallthru
      _
    // Predicated region
    $region10: #{tpu_custom_call.1} parent=1 // pred_check
      _
    $region11: #{tpu_custom_call.1} parent=1 // pred_check_branch
      %31 = sbr.rel (0) target = $region13
    $region12: #{tpu_custom_call.1} parent=1 // pred_region
      %32 = dma.done [#allocation4], 128
    $region13: #{tpu_custom_call.1} parent=1 // pred_fallthru
      _
    // Predicated region
    $region14: #{tpu_custom_call.1} parent=1 // pred_check
      _
    $region15: #{tpu_custom_call.1} parent=1 // pred_check_branch
      %34 = sbr.rel (0) target = $region17
    $region16: #{tpu_custom_call.1} parent=1 // pred_region
      %35 = dma.done [#allocation7], 128
    $region17: #{tpu_custom_call.1} parent=1 // pred_fallthru
      _
    %v36 = vld [vmem:[#allocation6] sm:$0xff]
    %v37 = vld [vmem:[#allocation3] sm:$0xff]
    %38 = vxpose.xlu0.b32.start [1/16] %v37, 128
    %39 = vxpose.xlu0.b32.cont [2/16] 0.0, 128
    %40 = vxpose.xlu0.b32.cont [3/16] 0.0, 128
    %41 = vxpose.xlu0.b32.cont [4/16] 0.0, 128
    %42 = vxpose.xlu0.b32.cont [5/16] 0.0, 128
    %43 = vxpose.xlu0.b32.cont [6/16] 0.0, 128
    %44 = vxpose.xlu0.b32.cont [7/16] 0.0, 128
    %45 = vxpose.xlu0.b32.cont [8/16] 0.0, 128
    %46 = vxpose.xlu0.b32.cont [9/16] 0.0, 128
    %47 = vxpose.xlu0.b32.cont [10/16] 0.0, 128
    %48 = vxpose.xlu0.b32.cont [11/16] 0.0, 128
    %49 = vxpose.xlu0.b32.cont [12/16] 0.0, 128
    %50 = vxpose.xlu0.b32.cont [13/16] 0.0, 128
    %51 = vxpose.xlu0.b32.cont [14/16] 0.0, 128
    %52 = vxpose.xlu0.b32.cont [15/16] 0.0, 128
    %53 = vxpose.xlu0.b32.end [16/16] 0.0, 128
    %v54 = vpop.trf.xlu0
    %v55 = vpop.trf.xlu0
    %v56 = vpop.trf.xlu0
    %v57 = vpop.trf.xlu0
    %v58 = vpop.trf.xlu0
    %v59 = vpop.trf.xlu0
    %v60 = vpop.trf.xlu0
    %v61 = vpop.trf.xlu0
    %v62 = vpop.trf.xlu0
    %v63 = vpop.trf.xlu0
    %v64 = vpop.trf.xlu0
    %v65 = vpop.trf.xlu0
    %v66 = vpop.trf.xlu0
    %v67 = vpop.trf.xlu0
    %v68 = vpop.trf.xlu0
    %v69 = vpop.trf.xlu0
    %vm70 = vcmp.ge.f32.partialorder %v54, -4.0
    %vm71 = vcmp.ge.f32.partialorder %v55, -4.0
    %v72 = vsel %vm70, 1, 0
    %v73 = vsel %vm71, 1, 0
    %v74 = vcvt.s32.f32 %v72
    %v75 = vcvt.s32.f32 %v73
    %vm76 = vcmp.ge.f32.partialorder %v54, -3.0
    %vm77 = vcmp.ge.f32.partialorder %v55, -3.0
    %v78 = vsel %vm76, 1, 0
    %v79 = vsel %vm77, 1, 0
    %v80 = vcvt.s32.f32 %v78
    %v81 = vcvt.s32.f32 %v79
    %vm82 = vcmp.ge.f32.partialorder %v54, -2.0
    %vm83 = vcmp.ge.f32.partialorder %v55, -2.0
    %v84 = vsel %vm82, 1, 0
    %v85 = vsel %vm83, 1, 0
    %v86 = vcvt.s32.f32 %v84
    %v87 = vcvt.s32.f32 %v85
    %vm88 = vcmp.ge.f32.partialorder %v54, -1.0
    %vm89 = vcmp.ge.f32.partialorder %v55, -1.0
    %v90 = vsel %vm88, 1, 0
    %v91 = vsel %vm89, 1, 0
    %v92 = vcvt.s32.f32 %v90
    %v93 = vcvt.s32.f32 %v91
    %vm94 = vcmp.ge.f32.partialorder %v54, 0.0
    %vm95 = vcmp.ge.f32.partialorder %v55, 0.0
    %v96 = vsel %vm94, 1, 0
    %v97 = vsel %vm95, 1, 0
    %v98 = vcvt.s32.f32 %v96
    %v99 = vcvt.s32.f32 %v97
    %vm100 = vcmp.gt.f32.partialorder %v54, 1.0
    %vm101 = vcmp.gt.f32.partialorder %v55, 1.0
    %v102 = vsel %vm100, 1, 0
    %v103 = vsel %vm101, 1, 0
    %v104 = vcvt.s32.f32 %v102
    %v105 = vcvt.s32.f32 %v103
    %vm106 = vcmp.ge.f32.partialorder %v54, 2.0
    %vm107 = vcmp.ge.f32.partialorder %v55, 2.0
    %v108 = vsel %vm106, 1, 0
    %v109 = vsel %vm107, 1, 0
    %v110 = vcvt.s32.f32 %v108
    %v111 = vcvt.s32.f32 %v109
    %vm112 = vcmp.ge.f32.partialorder %v54, 3.0
    %vm113 = vcmp.ge.f32.partialorder %v55, 3.0
    %v114 = vsel %vm112, 1, 0
    %v115 = vsel %vm113, 1, 0
    %v116 = vcvt.s32.f32 %v114
    %v117 = vcvt.s32.f32 %v115
    %vm118 = vcmp.ge.f32.partialorder %v54, 4.0
    %vm119 = vcmp.ge.f32.partialorder %v55, 4.0
    %v120 = vsel %vm118, 1, 0
    %v121 = vsel %vm119, 1, 0
    %v122 = vcvt.s32.f32 %v120
    %v123 = vcvt.s32.f32 %v121
    %v124 = vsub.f32 %v74, %v80
    %v125 = vsub.f32 %v75, %v81
    %v126 = vsub.f32 %v80, %v86
    %v127 = vsub.f32 %v81, %v87
    %v128 = vsub.f32 %v86, %v92
    %v129 = vsub.f32 %v87, %v93
    %v130 = vsub.f32 %v92, %v98
    %v131 = vsub.f32 %v93, %v99
    %v132 = vsub.f32 %v98, %v104
    %v133 = vsub.f32 %v99, %v105
    %v134 = vsub.f32 %v104, %v110
    %v135 = vsub.f32 %v105, %v111
    %v136 = vsub.f32 %v110, %v116
    %v137 = vsub.f32 %v111, %v117
    %v138 = vsub.f32 %v116, %v122
    %v139 = vsub.f32 %v117, %v123
    %v140 = vsub.f32 %v54, -4.0
    %v141 = vsub.f32 %v55, -4.0
    %v142 = vsub.f32 %v124, %v126
    %v143 = vsub.f32 %v125, %v127
    %v144 = vmul.f32 %v140, %v142
    %v145 = vmul.f32 %v141, %v143
    %v146 = vmul.f32 %v126, 2.0
    %v147 = vmul.f32 %v127, 2.0
    %v148 = vadd.f32 %v144, %v146
    %v149 = vadd.f32 %v145, %v147
    %v150 = vsub.f32 %v54, -3.0
    %v151 = vsub.f32 %v55, -3.0
    %v152 = vsub.f32 %v126, %v128
    %v153 = vsub.f32 %v127, %v129
    %v154 = vmul.f32 %v150, %v152
    %v155 = vmul.f32 %v151, %v153
    %v156 = vmul.f32 %v128, 2.0
    %v157 = vmul.f32 %v129, 2.0
    %v158 = vadd.f32 %v154, %v156
    %v159 = vadd.f32 %v155, %v157
    %v160 = vsub.f32 %v54, -2.0
    %v161 = vsub.f32 %v55, -2.0
    %v162 = vsub.f32 %v128, %v130
    %v163 = vsub.f32 %v129, %v131
    %v164 = vmul.f32 %v160, %v162
    %v165 = vmul.f32 %v161, %v163
    %v166 = vmul.f32 %v130, 2.0
    %v167 = vmul.f32 %v131, 2.0
    %v168 = vadd.f32 %v164, %v166
    %v169 = vadd.f32 %v165, %v167
    %v170 = vsub.f32 %v54, -1.0
    %v171 = vsub.f32 %v55, -1.0
    %v172 = vsub.f32 %v130, %v132
    %v173 = vsub.f32 %v131, %v133
    %v174 = vmul.f32 %v170, %v172
    %v175 = vmul.f32 %v171, %v173
    %v176 = vmul.f32 %v132, 2.0
    %v177 = vmul.f32 %v133, 2.0
    %v178 = vadd.f32 %v174, %v176
    %v179 = vadd.f32 %v175, %v177
    %v180 = vsub.f32 %v132, %v134
    %v181 = vsub.f32 %v133, %v135
    %v182 = vmul.f32 %v54, %v180
    %v183 = vmul.f32 %v55, %v181
    %v184 = vmul.f32 %v134, 2.0
    %v185 = vmul.f32 %v135, 2.0
    %v186 = vadd.f32 %v182, %v184
    %v187 = vadd.f32 %v183, %v185
    %v188 = vsub.f32 %v54, 1.0
    %v189 = vsub.f32 %v55, 1.0
    %v190 = vsub.f32 %v134, %v136
    %v191 = vsub.f32 %v135, %v137
    %v192 = vmul.f32 %v188, %v190
    %v193 = vmul.f32 %v189, %v191
    %v194 = vmul.f32 %v136, 2.0
    %v195 = vmul.f32 %v137, 2.0
    %v196 = vadd.f32 %v192, %v194
    %v197 = vadd.f32 %v193, %v195
    %v198 = vsub.f32 %v54, 2.0
    %v199 = vsub.f32 %v55, 2.0
    %v200 = vsub.f32 %v136, %v138
    %v201 = vsub.f32 %v137, %v139
    %v202 = vmul.f32 %v198, %v200
    %v203 = vmul.f32 %v199, %v201
    %v204 = vmul.f32 %v138, 2.0
    %v205 = vmul.f32 %v139, 2.0
    %v206 = vadd.f32 %v202, %v204
    %v207 = vadd.f32 %v203, %v205
    %v208 = vsub.f32 %v148, %v158
    %v209 = vsub.f32 %v149, %v159
    %v210 = vmul.f32 %v208, 0.5
    %v211 = vmul.f32 %v209, 0.5
    %v212 = vmul.f32 %v140, %v210
    %v213 = vmul.f32 %v141, %v211
    %v214 = vmul.f32 %v158, 1.5
    %v215 = vmul.f32 %v159, 1.5
    %v216 = vadd.f32 %v212, %v214
    %v217 = vadd.f32 %v213, %v215
    %v218 = vsub.f32 %v158, %v168
    %v219 = vsub.f32 %v159, %v169
    %v220 = vmul.f32 %v218, 0.5
    %v221 = vmul.f32 %v219, 0.5
    %v222 = vmul.f32 %v150, %v220
    %v223 = vmul.f32 %v151, %v221
    %v224 = vmul.f32 %v168, 1.5
    %v225 = vmul.f32 %v169, 1.5
    %v226 = vadd.f32 %v222, %v224
    %v227 = vadd.f32 %v223, %v225
    %v228 = vsub.f32 %v168, %v178
    %v229 = vsub.f32 %v169, %v179
    %v230 = vmul.f32 %v228, 0.5
    %v231 = vmul.f32 %v229, 0.5
    %v232 = vmul.f32 %v160, %v230
    %v233 = vmul.f32 %v161, %v231
    %v234 = vmul.f32 %v178, 1.5
    %v235 = vmul.f32 %v179, 1.5
    %v236 = vadd.f32 %v232, %v234
    %v237 = vadd.f32 %v233, %v235
    %v238 = vsub.f32 %v178, %v186
    %v239 = vsub.f32 %v179, %v187
    %v240 = vmul.f32 %v238, 0.5
    %v241 = vmul.f32 %v239, 0.5
    %v242 = vmul.f32 %v170, %v240
    %v243 = vmul.f32 %v171, %v241
    %v244 = vmul.f32 %v186, 1.5
    %v245 = vmul.f32 %v187, 1.5
    %v246 = vadd.f32 %v242, %v244
    %v247 = vadd.f32 %v243, %v245
    %v248 = vsub.f32 %v186, %v196
    %v249 = vsub.f32 %v187, %v197
    %v250 = vmul.f32 %v248, 0.5
    %v251 = vmul.f32 %v249, 0.5
    %v252 = vmul.f32 %v54, %v250
    %v253 = vmul.f32 %v55, %v251
    %v254 = vmul.f32 %v196, 1.5
    %v255 = vmul.f32 %v197, 1.5
    %v256 = vadd.f32 %v252, %v254
    %v257 = vadd.f32 %v253, %v255
    %v258 = vsub.f32 %v196, %v206
    %v259 = vsub.f32 %v197, %v207
    %v260 = vmul.f32 %v258, 0.5
    %v261 = vmul.f32 %v259, 0.5
    %v262 = vmul.f32 %v188, %v260
    %v263 = vmul.f32 %v189, %v261
    %v264 = vmul.f32 %v206, 1.5
    %v265 = vmul.f32 %v207, 1.5
    %v266 = vadd.f32 %v262, %v264
    %v267 = vadd.f32 %v263, %v265
    %v268 = vsub.f32 %v216, %v226
    %v269 = vsub.f32 %v217, %v227
    %v270 = vmul.f32 %v268, 0.33333334
    %v271 = vmul.f32 %v269, 0.33333334
    %v272 = vmul.f32 %v140, %v270
    %v273 = vmul.f32 %v141, %v271
    %v274 = vmul.f32 %v226, 1.3333334
    %v275 = vmul.f32 %v227, 1.3333334
    %v276 = vadd.f32 %v272, %v274
    %v277 = vadd.f32 %v273, %v275
    %v278 = vsub.f32 %v226, %v236
    %v279 = vsub.f32 %v227, %v237
    %v280 = vmul.f32 %v278, 0.33333334
    %v281 = vmul.f32 %v279, 0.33333334
    %v282 = vmul.f32 %v150, %v280
    %v283 = vmul.f32 %v151, %v281
    %v284 = vmul.f32 %v236, 1.3333334
    %v285 = vmul.f32 %v237, 1.3333334
    %v286 = vadd.f32 %v282, %v284
    %v287 = vadd.f32 %v283, %v285
    %v288 = vsub.f32 %v236, %v246
    %v289 = vsub.f32 %v237, %v247
    %v290 = vmul.f32 %v288, 0.33333334
    %v291 = vmul.f32 %v289, 0.33333334
    %v292 = vmul.f32 %v160, %v290
    %v293 = vmul.f32 %v161, %v291
    %v294 = vmul.f32 %v246, 1.3333334
    %v295 = vmul.f32 %v247, 1.3333334
    %v296 = vadd.f32 %v292, %v294
    %v297 = vadd.f32 %v293, %v295
    %v298 = vsub.f32 %v246, %v256
    %v299 = vsub.f32 %v247, %v257
    %v300 = vmul.f32 %v298, 0.33333334
    %v301 = vmul.f32 %v299, 0.33333334
    %v302 = vmul.f32 %v170, %v300
    %v303 = vmul.f32 %v171, %v301
    %v304 = vmul.f32 %v256, 1.3333334
    %v305 = vmul.f32 %v257, 1.3333334
    %v306 = vadd.f32 %v302, %v304
    %v307 = vadd.f32 %v303, %v305
    %v308 = vsub.f32 %v256, %v266
    %v309 = vsub.f32 %v257, %v267
    %v310 = vmul.f32 %v308, 0.33333334
    %v311 = vmul.f32 %v309, 0.33333334
    %v312 = vmul.f32 %v54, %v310
    %v313 = vmul.f32 %v55, %v311
    %v314 = vmul.f32 %v266, 1.3333334
    %v315 = vmul.f32 %v267, 1.3333334
    %v316 = vadd.f32 %v312, %v314
    %v317 = vadd.f32 %v313, %v315
    %vm318 = vcmask 64512
    %319 = vst.msk [vmem:[#allocation2] sm:$0xff] %vm318, %v276
    %320 = vst.msk [vmem:[#allocation2 + $0x8] sm:$0xff] %vm318, %v277
    %321 = vst.msk [vmem:[#allocation2 + $0x10] sm:$0xff] %vm318, %v286
    %322 = vst.msk [vmem:[#allocation2 + $0x18] sm:$0xff] %vm318, %v287
    %323 = vst.msk [vmem:[#allocation2 + $0x20] sm:$0xff] %vm318, %v296
    %324 = vst.msk [vmem:[#allocation2 + $0x28] sm:$0xff] %vm318, %v297
    %325 = vst.msk [vmem:[#allocation2 + $0x30] sm:$0xff] %vm318, %v306
    %326 = vst.msk [vmem:[#allocation2 + $0x38] sm:$0xff] %vm318, %v307
    %327 = vst.msk [vmem:[#allocation2 + $0x40] sm:$0xff] %vm318, %v316
    %328 = vst.msk [vmem:[#allocation2 + $0x48] sm:$0xff] %vm318, %v317
    %v329 = vld [vmem:[#allocation2] sm:$0xff]
    %v330 = vld [vmem:[#allocation2 + $0x8] sm:$0xff]
    %v331 = vld [vmem:[#allocation2 + $0x10] sm:$0xff]
    %v332 = vld [vmem:[#allocation2 + $0x18] sm:$0xff]
    %v333 = vld [vmem:[#allocation2 + $0x20] sm:$0xff]
    %v334 = vld [vmem:[#allocation2 + $0x28] sm:$0xff]
    %v335 = vld [vmem:[#allocation2 + $0x30] sm:$0xff]
    %v336 = vld [vmem:[#allocation2 + $0x38] sm:$0xff]
    %v337 = vld [vmem:[#allocation2 + $0x40] sm:$0xff]
    %v338 = vld [vmem:[#allocation2 + $0x48] sm:$0xff]
    %vm339 = vcmask 654336
    %v341 = vsel %vm339, %v36, 0
    %343 = vmatprep.subr.mxu0 0.0
    %v344 = vand.u32 %v329, 4294901760
    %345 = vmatpush1.msra.mxu0 %v344
    %346 = vmatprep.subr.mxu0 0.0
    %v347 = vand.u32 %v330, 4294901760
    %348 = vmatpush1.msra.mxu0 %v347
    %349 = vmatprep.subr.mxu0 0.0
    %v350 = vand.u32 %v331, 4294901760
    %351 = vmatpush1.msra.mxu0 %v350
    %352 = vmatprep.subr.mxu0 0.0
    %v353 = vand.u32 %v332, 4294901760
    %354 = vmatpush1.msra.mxu0 %v353
    %355 = vmatprep.subr.mxu0 0.0
    %v356 = vand.u32 %v333, 4294901760
    %357 = vmatpush1.msra.mxu0 %v356
    %358 = vmatprep.subr.mxu0 0.0
    %v359 = vand.u32 %v334, 4294901760
    %360 = vmatpush1.msra.mxu0 %v359
    %361 = vmatprep.subr.mxu0 0.0
    %v362 = vand.u32 %v335, 4294901760
    %363 = vmatpush1.msra.mxu0 %v362
    %364 = vmatprep.subr.mxu0 0.0
    %v365 = vand.u32 %v336, 4294901760
    %366 = vmatpush1.msra.mxu0 %v365
    %367 = vmatprep.subr.mxu0 0.0
    %v368 = vand.u32 %v337, 4294901760
    %369 = vmatpush1.msra.mxu0 %v368
    %370 = vmatprep.subr.mxu0 0.0
    %v371 = vand.u32 %v338, 4294901760
    %372 = vmatpush1.msra.mxu0 %v371
    %373 = vmatprep.subr.mxu0 0.0
    %374 = vmatpush1.msra.mxu0 0.0
    %375 = vmatprep.subr.mxu0 0.0
    %376 = vmatpush1.msra.mxu0 0.0
    %377 = vmatprep.subr.mxu0 0.0
    %378 = vmatpush1.msra.mxu0 0.0
    %379 = vmatprep.subr.mxu0 0.0
    %380 = vmatpush1.msra.mxu0 0.0
    %381 = vmatprep.subr.mxu0 0.0
    %382 = vmatpush1.msra.mxu0 0.0
    %383 = vmatprep.subr.mxu0 0.0
    %384 = vmatpush1.msra.mxu0 0.0
    %385 = vmatprep.subr.mxu0 0.0
    %386 = vmatpush1.msra.mxu0 0.0
    %387 = vmatprep.subr.mxu0 0.0
    %388 = vmatpush1.msra.mxu0 0.0
    %389 = vmatprep.subr.mxu0 0.0
    %390 = vmatpush1.msra.mxu0 0.0
    %391 = vmatprep.subr.mxu0 0.0
    %392 = vmatpush1.msra.mxu0 0.0
    %393 = vmatprep.subr.mxu0 0.0
    %394 = vmatpush1.msra.mxu0 0.0
    %395 = vmatprep.subr.mxu0 0.0
    %396 = vmatpush1.msra.mxu0 0.0
    %397 = vmatprep.subr.mxu0 0.0
    %398 = vmatpush1.msra.mxu0 0.0
    %399 = vmatprep.subr.mxu0 0.0
    %400 = vmatpush1.msra.mxu0 0.0
    %401 = vmatprep.subr.mxu0 0.0
    %402 = vmatpush1.msra.mxu0 0.0
    %403 = vmatprep.subr.mxu0 0.0
    %404 = vmatpush1.msra.mxu0 0.0
    %405 = vmatprep.subr.mxu0 0.0
    %406 = vmatpush1.msra.mxu0 0.0
    %407 = vmatprep.subr.mxu0 0.0
    %408 = vmatpush1.msra.mxu0 0.0
    %409 = vmatprep.subr.mxu0 0.0
    %410 = vmatpush1.msra.mxu0 0.0
    %411 = vmatprep.subr.mxu0 0.0
    %412 = vmatpush1.msra.mxu0 0.0
    %413 = vmatprep.subr.mxu0 0.0
    %414 = vmatpush1.msra.mxu0 0.0
    %415 = vmatprep.subr.mxu0 0.0
    %416 = vmatpush1.msra.mxu0 0.0
    %417 = vmatprep.mubr.f32.mxu0 0.0
    %v418 = vand.u32 %v341, 4294901760
    %v419 = vsub.f32 %v341, %v418
    %v420 = vand.u32 %v419, 4294901760
    %v421 = vsub.f32 %v419, %v420
    %v422 = vand.u32 %v421, 4294901760
    %423 = vmatmul.mubr.f32.gmra.mrb[0].mxu0 %v422
    %v424 = vpop.f32.mrb[0].mxu0
    %v425 = vadd.f32 0.0, %v424
    %v426 = vpop.f32.mrb[0].mxu0
    %427 = vdwg.mxu0
    %428 = vmatprep.subr.mxu0 0.0
    %v429 = vand.u32 %v329, 4294901760
    %v430 = vsub.f32 %v329, %v429
    %v431 = vand.u32 %v430, 4294901760
    %v432 = vsub.f32 %v430, %v431
    %v433 = vand.u32 %v432, 4294901760
    %434 = vmatpush1.msra.mxu0 %v433
    %435 = vmatprep.subr.mxu0 0.0
    %v436 = vand.u32 %v330, 4294901760
    %v437 = vsub.f32 %v330, %v436
    %v438 = vand.u32 %v437, 4294901760
    %v439 = vsub.f32 %v437, %v438
    %v440 = vand.u32 %v439, 4294901760
    %441 = vmatpush1.msra.mxu0 %v440
    %442 = vmatprep.subr.mxu0 0.0
    %v443 = vand.u32 %v331, 4294901760
    %v444 = vsub.f32 %v331, %v443
    %v445 = vand.u32 %v444, 4294901760
    %v446 = vsub.f32 %v444, %v445
    %v447 = vand.u32 %v446, 4294901760
    %448 = vmatpush1.msra.mxu0 %v447
    %449 = vmatprep.subr.mxu0 0.0
    %v450 = vand.u32 %v332, 4294901760
    %v451 = vsub.f32 %v332, %v450
    %v452 = vand.u32 %v451, 4294901760
    %v453 = vsub.f32 %v451, %v452
    %v454 = vand.u32 %v453, 4294901760
    %455 = vmatpush1.msra.mxu0 %v454
    %456 = vmatprep.subr.mxu0 0.0
    %v457 = vand.u32 %v333, 4294901760
    %v458 = vsub.f32 %v333, %v457
    %v459 = vand.u32 %v458, 4294901760
    %v460 = vsub.f32 %v458, %v459
    %v461 = vand.u32 %v460, 4294901760
    %462 = vmatpush1.msra.mxu0 %v461
    %463 = vmatprep.subr.mxu0 0.0
    %v464 = vand.u32 %v334, 4294901760
    %v465 = vsub.f32 %v334, %v464
    %v466 = vand.u32 %v465, 4294901760
    %v467 = vsub.f32 %v465, %v466
    %v468 = vand.u32 %v467, 4294901760
    %469 = vmatpush1.msra.mxu0 %v468
    %470 = vmatprep.subr.mxu0 0.0
    %v471 = vand.u32 %v335, 4294901760
    %v472 = vsub.f32 %v335, %v471
    %v473 = vand.u32 %v472, 4294901760
    %v474 = vsub.f32 %v472, %v473
    %v475 = vand.u32 %v474, 4294901760
    %476 = vmatpush1.msra.mxu0 %v475
    %477 = vmatprep.subr.mxu0 0.0
    %v478 = vand.u32 %v336, 4294901760
    %v479 = vsub.f32 %v336, %v478
    %v480 = vand.u32 %v479, 4294901760
    %v481 = vsub.f32 %v479, %v480
    %v482 = vand.u32 %v481, 4294901760
    %483 = vmatpush1.msra.mxu0 %v482
    %484 = vmatprep.subr.mxu0 0.0
    %v485 = vand.u32 %v337, 4294901760
    %v486 = vsub.f32 %v337, %v485
    %v487 = vand.u32 %v486, 4294901760
    %v488 = vsub.f32 %v486, %v487
    %v489 = vand.u32 %v488, 4294901760
    %490 = vmatpush1.msra.mxu0 %v489
    %491 = vmatprep.subr.mxu0 0.0
    %v492 = vand.u32 %v338, 4294901760
    %v493 = vsub.f32 %v338, %v492
    %v494 = vand.u32 %v493, 4294901760
    %v495 = vsub.f32 %v493, %v494
    %v496 = vand.u32 %v495, 4294901760
    %497 = vmatpush1.msra.mxu0 %v496
    %498 = vmatprep.subr.mxu0 0.0
    %499 = vmatpush1.msra.mxu0 0.0
    %500 = vmatprep.subr.mxu0 0.0
    %501 = vmatpush1.msra.mxu0 0.0
    %502 = vmatprep.subr.mxu0 0.0
    %503 = vmatpush1.msra.mxu0 0.0
    %504 = vmatprep.subr.mxu0 0.0
    %505 = vmatpush1.msra.mxu0 0.0
    %506 = vmatprep.subr.mxu0 0.0
    %507 = vmatpush1.msra.mxu0 0.0
    %508 = vmatprep.subr.mxu0 0.0
    %509 = vmatpush1.msra.mxu0 0.0
    %510 = vmatprep.subr.mxu0 0.0
    %511 = vmatpush1.msra.mxu0 0.0
    %512 = vmatprep.subr.mxu0 0.0
    %513 = vmatpush1.msra.mxu0 0.0
    %514 = vmatprep.subr.mxu0 0.0
    %515 = vmatpush1.msra.mxu0 0.0
    %516 = vmatprep.subr.mxu0 0.0
    %517 = vmatpush1.msra.mxu0 0.0
    %518 = vmatprep.subr.mxu0 0.0
    %519 = vmatpush1.msra.mxu0 0.0
    %520 = vmatprep.subr.mxu0 0.0
    %521 = vmatpush1.msra.mxu0 0.0
    %522 = vmatprep.subr.mxu0 0.0
    %523 = vmatpush1.msra.mxu0 0.0
    %524 = vmatprep.subr.mxu0 0.0
    %525 = vmatpush1.msra.mxu0 0.0
    %526 = vmatprep.subr.mxu0 0.0
    %527 = vmatpush1.msra.mxu0 0.0
    %528 = vmatprep.subr.mxu0 0.0
    %529 = vmatpush1.msra.mxu0 0.0
    %530 = vmatprep.subr.mxu0 0.0
    %531 = vmatpush1.msra.mxu0 0.0
    %532 = vmatprep.subr.mxu0 0.0
    %533 = vmatpush1.msra.mxu0 0.0
    %534 = vmatprep.subr.mxu0 0.0
    %535 = vmatpush1.msra.mxu0 0.0
    %536 = vmatprep.subr.mxu0 0.0
    %537 = vmatpush1.msra.mxu0 0.0
    %538 = vmatprep.subr.mxu0 0.0
    %539 = vmatpush1.msra.mxu0 0.0
    %540 = vmatprep.subr.mxu0 0.0
    %541 = vmatpush1.msra.mxu0 0.0
    %542 = vmatprep.mubr.f32.mxu0 0.0
    %v543 = vand.u32 %v341, 4294901760
    %544 = vmatmul.mubr.f32.gmra.mrb[0].mxu0 %v543
    %v545 = vpop.f32.mrb[0].mxu0
    %v546 = vadd.f32 %v425, %v545
    %v547 = vpop.f32.mrb[0].mxu0
    %548 = vdwg.mxu0
    %549 = vmatprep.subr.mxu0 0.0
    %v550 = vand.u32 %v329, 4294901760
    %v551 = vsub.f32 %v329, %v550
    %552 = vmatpush1.msra.mxu0 %v551
    %553 = vmatprep.subr.mxu0 0.0
    %v554 = vand.u32 %v330, 4294901760
    %v555 = vsub.f32 %v330, %v554
    %556 = vmatpush1.msra.mxu0 %v555
    %557 = vmatprep.subr.mxu0 0.0
    %v558 = vand.u32 %v331, 4294901760
    %v559 = vsub.f32 %v331, %v558
    %560 = vmatpush1.msra.mxu0 %v559
    %561 = vmatprep.subr.mxu0 0.0
    %v562 = vand.u32 %v332, 4294901760
    %v563 = vsub.f32 %v332, %v562
    %564 = vmatpush1.msra.mxu0 %v563
    %565 = vmatprep.subr.mxu0 0.0
    %v566 = vand.u32 %v333, 4294901760
    %v567 = vsub.f32 %v333, %v566
    %568 = vmatpush1.msra.mxu0 %v567
    %569 = vmatprep.subr.mxu0 0.0
    %v570 = vand.u32 %v334, 4294901760
    %v571 = vsub.f32 %v334, %v570
    %572 = vmatpush1.msra.mxu0 %v571
    %573 = vmatprep.subr.mxu0 0.0
    %v574 = vand.u32 %v335, 4294901760
    %v575 = vsub.f32 %v335, %v574
    %576 = vmatpush1.msra.mxu0 %v575
    %577 = vmatprep.subr.mxu0 0.0
    %v578 = vand.u32 %v336, 4294901760
    %v579 = vsub.f32 %v336, %v578
    %580 = vmatpush1.msra.mxu0 %v579
    %581 = vmatprep.subr.mxu0 0.0
    %v582 = vand.u32 %v337, 4294901760
    %v583 = vsub.f32 %v337, %v582
    %584 = vmatpush1.msra.mxu0 %v583
    %585 = vmatprep.subr.mxu0 0.0
    %v586 = vand.u32 %v338, 4294901760
    %v587 = vsub.f32 %v338, %v586
    %588 = vmatpush1.msra.mxu0 %v587
    %589 = vmatprep.subr.mxu0 0.0
    %590 = vmatpush1.msra.mxu0 0.0
    %591 = vmatprep.subr.mxu0 0.0
    %592 = vmatpush1.msra.mxu0 0.0
    %593 = vmatprep.subr.mxu0 0.0
    %594 = vmatpush1.msra.mxu0 0.0
    %595 = vmatprep.subr.mxu0 0.0
    %596 = vmatpush1.msra.mxu0 0.0
    %597 = vmatprep.subr.mxu0 0.0
    %598 = vmatpush1.msra.mxu0 0.0
    %599 = vmatprep.subr.mxu0 0.0
    %600 = vmatpush1.msra.mxu0 0.0
    %601 = vmatprep.subr.mxu0 0.0
    %602 = vmatpush1.msra.mxu0 0.0
    %603 = vmatprep.subr.mxu0 0.0
    %604 = vmatpush1.msra.mxu0 0.0
    %605 = vmatprep.subr.mxu0 0.0
    %606 = vmatpush1.msra.mxu0 0.0
    %607 = vmatprep.subr.mxu0 0.0
    %608 = vmatpush1.msra.mxu0 0.0
    %609 = vmatprep.subr.mxu0 0.0
    %610 = vmatpush1.msra.mxu0 0.0
    %611 = vmatprep.subr.mxu0 0.0
    %612 = vmatpush1.msra.mxu0 0.0
    %613 = vmatprep.subr.mxu0 0.0
    %614 = vmatpush1.msra.mxu0 0.0
    %615 = vmatprep.subr.mxu0 0.0
    %616 = vmatpush1.msra.mxu0 0.0
    %617 = vmatprep.subr.mxu0 0.0
    %618 = vmatpush1.msra.mxu0 0.0
    %619 = vmatprep.subr.mxu0 0.0
    %620 = vmatpush1.msra.mxu0 0.0
    %621 = vmatprep.subr.mxu0 0.0
    %622 = vmatpush1.msra.mxu0 0.0
    %623 = vmatprep.subr.mxu0 0.0
    %624 = vmatpush1.msra.mxu0 0.0
    %625 = vmatprep.subr.mxu0 0.0
    %626 = vmatpush1.msra.mxu0 0.0
    %627 = vmatprep.subr.mxu0 0.0
    %628 = vmatpush1.msra.mxu0 0.0
    %629 = vmatprep.subr.mxu0 0.0
    %630 = vmatpush1.msra.mxu0 0.0
    %631 = vmatprep.subr.mxu0 0.0
    %632 = vmatpush1.msra.mxu0 0.0
    %633 = vmatprep.mubr.f32.mxu0 0.0
    %v634 = vand.u32 %v341, 4294901760
    %v635 = vsub.f32 %v341, %v634
    %636 = vmatmul.mubr.f32.gmra.mrb[0].mxu0 %v635
    %v637 = vpop.f32.mrb[0].mxu0
    %v638 = vadd.f32 %v546, %v637
    %v639 = vpop.f32.mrb[0].mxu0
    %640 = vdwg.mxu0
    %641 = vmatprep.subr.mxu0 0.0
    %v642 = vand.u32 %v329, 4294901760
    %643 = vmatpush1.msra.mxu0 %v642
    %644 = vmatprep.subr.mxu0 0.0
    %v645 = vand.u32 %v330, 4294901760
    %646 = vmatpush1.msra.mxu0 %v645
    %647 = vmatprep.subr.mxu0 0.0
    %v648 = vand.u32 %v331, 4294901760
    %649 = vmatpush1.msra.mxu0 %v648
    %650 = vmatprep.subr.mxu0 0.0
    %v651 = vand.u32 %v332, 4294901760
    %652 = vmatpush1.msra.mxu0 %v651
    %653 = vmatprep.subr.mxu0 0.0
    %v654 = vand.u32 %v333, 4294901760
    %655 = vmatpush1.msra.mxu0 %v654
    %656 = vmatprep.subr.mxu0 0.0
    %v657 = vand.u32 %v334, 4294901760
    %658 = vmatpush1.msra.mxu0 %v657
    %659 = vmatprep.subr.mxu0 0.0
    %v660 = vand.u32 %v335, 4294901760
    %661 = vmatpush1.msra.mxu0 %v660
    %662 = vmatprep.subr.mxu0 0.0
    %v663 = vand.u32 %v336, 4294901760
    %664 = vmatpush1.msra.mxu0 %v663
    %665 = vmatprep.subr.mxu0 0.0
    %v666 = vand.u32 %v337, 4294901760
    %667 = vmatpush1.msra.mxu0 %v666
    %668 = vmatprep.subr.mxu0 0.0
    %v669 = vand.u32 %v338, 4294901760
    %670 = vmatpush1.msra.mxu0 %v669
    %671 = vmatprep.subr.mxu0 0.0
    %672 = vmatpush1.msra.mxu0 0.0
    %673 = vmatprep.subr.mxu0 0.0
    %674 = vmatpush1.msra.mxu0 0.0
    %675 = vmatprep.subr.mxu0 0.0
    %676 = vmatpush1.msra.mxu0 0.0
    %677 = vmatprep.subr.mxu0 0.0
    %678 = vmatpush1.msra.mxu0 0.0
    %679 = vmatprep.subr.mxu0 0.0
    %680 = vmatpush1.msra.mxu0 0.0
    %681 = vmatprep.subr.mxu0 0.0
    %682 = vmatpush1.msra.mxu0 0.0
    %683 = vmatprep.subr.mxu0 0.0
    %684 = vmatpush1.msra.mxu0 0.0
    %685 = vmatprep.subr.mxu0 0.0
    %686 = vmatpush1.msra.mxu0 0.0
    %687 = vmatprep.subr.mxu0 0.0
    %688 = vmatpush1.msra.mxu0 0.0
    %689 = vmatprep.subr.mxu0 0.0
    %690 = vmatpush1.msra.mxu0 0.0
    %691 = vmatprep.subr.mxu0 0.0
    %692 = vmatpush1.msra.mxu0 0.0
    %693 = vmatprep.subr.mxu0 0.0
    %694 = vmatpush1.msra.mxu0 0.0
    %695 = vmatprep.subr.mxu0 0.0
    %696 = vmatpush1.msra.mxu0 0.0
    %697 = vmatprep.subr.mxu0 0.0
    %698 = vmatpush1.msra.mxu0 0.0
    %699 = vmatprep.subr.mxu0 0.0
    %700 = vmatpush1.msra.mxu0 0.0
    %701 = vmatprep.subr.mxu0 0.0
    %702 = vmatpush1.msra.mxu0 0.0
    %703 = vmatprep.subr.mxu0 0.0
    %704 = vmatpush1.msra.mxu0 0.0
    %705 = vmatprep.subr.mxu0 0.0
    %706 = vmatpush1.msra.mxu0 0.0
    %707 = vmatprep.subr.mxu0 0.0
    %708 = vmatpush1.msra.mxu0 0.0
    %709 = vmatprep.subr.mxu0 0.0
    %710 = vmatpush1.msra.mxu0 0.0
    %711 = vmatprep.subr.mxu0 0.0
    %712 = vmatpush1.msra.mxu0 0.0
    %713 = vmatprep.subr.mxu0 0.0
    %714 = vmatpush1.msra.mxu0 0.0
    %715 = vmatprep.mubr.f32.mxu0 0.0
    %v716 = vand.u32 %v341, 4294901760
    %v717 = vsub.f32 %v341, %v716
    %v718 = vand.u32 %v717, 4294901760
    %719 = vmatmul.mubr.f32.gmra.mrb[0].mxu0 %v718
    %v720 = vpop.f32.mrb[0].mxu0
    %v721 = vadd.f32 %v638, %v720
    %v722 = vpop.f32.mrb[0].mxu0
    %723 = vdwg.mxu0
    %724 = vmatprep.subr.mxu0 0.0
    %v725 = vand.u32 %v329, 4294901760
    %v726 = vsub.f32 %v329, %v725
    %v727 = vand.u32 %v726, 4294901760
    %728 = vmatpush1.msra.mxu0 %v727
    %729 = vmatprep.subr.mxu0 0.0
    %v730 = vand.u32 %v330, 4294901760
    %v731 = vsub.f32 %v330, %v730
    %v732 = vand.u32 %v731, 4294901760
    %733 = vmatpush1.msra.mxu0 %v732
    %734 = vmatprep.subr.mxu0 0.0
    %v735 = vand.u32 %v331, 4294901760
    %v736 = vsub.f32 %v331, %v735
    %v737 = vand.u32 %v736, 4294901760
    %738 = vmatpush1.msra.mxu0 %v737
    %739 = vmatprep.subr.mxu0 0.0
    %v740 = vand.u32 %v332, 4294901760
    %v741 = vsub.f32 %v332, %v740
    %v742 = vand.u32 %v741, 4294901760
    %743 = vmatpush1.msra.mxu0 %v742
    %744 = vmatprep.subr.mxu0 0.0
    %v745 = vand.u32 %v333, 4294901760
    %v746 = vsub.f32 %v333, %v745
    %v747 = vand.u32 %v746, 4294901760
    %748 = vmatpush1.msra.mxu0 %v747
    %749 = vmatprep.subr.mxu0 0.0
    %v750 = vand.u32 %v334, 4294901760
    %v751 = vsub.f32 %v334, %v750
    %v752 = vand.u32 %v751, 4294901760
    %753 = vmatpush1.msra.mxu0 %v752
    %754 = vmatprep.subr.mxu0 0.0
    %v755 = vand.u32 %v335, 4294901760
    %v756 = vsub.f32 %v335, %v755
    %v757 = vand.u32 %v756, 4294901760
    %758 = vmatpush1.msra.mxu0 %v757
    %759 = vmatprep.subr.mxu0 0.0
    %v760 = vand.u32 %v336, 4294901760
    %v761 = vsub.f32 %v336, %v760
    %v762 = vand.u32 %v761, 4294901760
    %763 = vmatpush1.msra.mxu0 %v762
    %764 = vmatprep.subr.mxu0 0.0
    %v765 = vand.u32 %v337, 4294901760
    %v766 = vsub.f32 %v337, %v765
    %v767 = vand.u32 %v766, 4294901760
    %768 = vmatpush1.msra.mxu0 %v767
    %769 = vmatprep.subr.mxu0 0.0
    %v770 = vand.u32 %v338, 4294901760
    %v771 = vsub.f32 %v338, %v770
    %v772 = vand.u32 %v771, 4294901760
    %773 = vmatpush1.msra.mxu0 %v772
    %774 = vmatprep.subr.mxu0 0.0
    %775 = vmatpush1.msra.mxu0 0.0
    %776 = vmatprep.subr.mxu0 0.0
    %777 = vmatpush1.msra.mxu0 0.0
    %778 = vmatprep.subr.mxu0 0.0
    %779 = vmatpush1.msra.mxu0 0.0
    %780 = vmatprep.subr.mxu0 0.0
    %781 = vmatpush1.msra.mxu0 0.0
    %782 = vmatprep.subr.mxu0 0.0
    %783 = vmatpush1.msra.mxu0 0.0
    %784 = vmatprep.subr.mxu0 0.0
    %785 = vmatpush1.msra.mxu0 0.0
    %786 = vmatprep.subr.mxu0 0.0
    %787 = vmatpush1.msra.mxu0 0.0
    %788 = vmatprep.subr.mxu0 0.0
    %789 = vmatpush1.msra.mxu0 0.0
    %790 = vmatprep.subr.mxu0 0.0
    %791 = vmatpush1.msra.mxu0 0.0
    %792 = vmatprep.subr.mxu0 0.0
    %793 = vmatpush1.msra.mxu0 0.0
    %794 = vmatprep.subr.mxu0 0.0
    %795 = vmatpush1.msra.mxu0 0.0
    %796 = vmatprep.subr.mxu0 0.0
    %797 = vmatpush1.msra.mxu0 0.0
    %798 = vmatprep.subr.mxu0 0.0
    %799 = vmatpush1.msra.mxu0 0.0
    %800 = vmatprep.subr.mxu0 0.0
    %801 = vmatpush1.msra.mxu0 0.0
    %802 = vmatprep.subr.mxu0 0.0
    %803 = vmatpush1.msra.mxu0 0.0
    %804 = vmatprep.subr.mxu0 0.0
    %805 = vmatpush1.msra.mxu0 0.0
    %806 = vmatprep.subr.mxu0 0.0
    %807 = vmatpush1.msra.mxu0 0.0
    %808 = vmatprep.subr.mxu0 0.0
    %809 = vmatpush1.msra.mxu0 0.0
    %810 = vmatprep.subr.mxu0 0.0
    %811 = vmatpush1.msra.mxu0 0.0
    %812 = vmatprep.subr.mxu0 0.0
    %813 = vmatpush1.msra.mxu0 0.0
    %814 = vmatprep.subr.mxu0 0.0
    %815 = vmatpush1.msra.mxu0 0.0
    %816 = vmatprep.subr.mxu0 0.0
    %817 = vmatpush1.msra.mxu0 0.0
    %818 = vmatprep.mubr.f32.mxu0 0.0
    %v819 = vand.u32 %v341, 4294901760
    %820 = vmatmul.mubr.f32.gmra.mrb[0].mxu0 %v819
    %v821 = vpop.f32.mrb[0].mxu0
    %v822 = vadd.f32 %v721, %v821
    %v823 = vpop.f32.mrb[0].mxu0
    %824 = vdwg.mxu0
    %825 = vmatprep.subr.mxu0 0.0
    %v826 = vand.u32 %v329, 4294901760
    %827 = vmatpush1.msra.mxu0 %v826
    %828 = vmatprep.subr.mxu0 0.0
    %v829 = vand.u32 %v330, 4294901760
    %830 = vmatpush1.msra.mxu0 %v829
    %831 = vmatprep.subr.mxu0 0.0
    %v832 = vand.u32 %v331, 4294901760
    %833 = vmatpush1.msra.mxu0 %v832
    %834 = vmatprep.subr.mxu0 0.0
    %v835 = vand.u32 %v332, 4294901760
    %836 = vmatpush1.msra.mxu0 %v835
    %837 = vmatprep.subr.mxu0 0.0
    %v838 = vand.u32 %v333, 4294901760
    %839 = vmatpush1.msra.mxu0 %v838
    %840 = vmatprep.subr.mxu0 0.0
    %v841 = vand.u32 %v334, 4294901760
    %842 = vmatpush1.msra.mxu0 %v841
    %843 = vmatprep.subr.mxu0 0.0
    %v844 = vand.u32 %v335, 4294901760
    %845 = vmatpush1.msra.mxu0 %v844
    %846 = vmatprep.subr.mxu0 0.0
    %v847 = vand.u32 %v336, 4294901760
    %848 = vmatpush1.msra.mxu0 %v847
    %849 = vmatprep.subr.mxu0 0.0
    %v850 = vand.u32 %v337, 4294901760
    %851 = vmatpush1.msra.mxu0 %v850
    %852 = vmatprep.subr.mxu0 0.0
    %v853 = vand.u32 %v338, 4294901760
    %854 = vmatpush1.msra.mxu0 %v853
    %855 = vmatprep.subr.mxu0 0.0
    %856 = vmatpush1.msra.mxu0 0.0
    %857 = vmatprep.subr.mxu0 0.0
    %858 = vmatpush1.msra.mxu0 0.0
    %859 = vmatprep.subr.mxu0 0.0
    %860 = vmatpush1.msra.mxu0 0.0
    %861 = vmatprep.subr.mxu0 0.0
    %862 = vmatpush1.msra.mxu0 0.0
    %863 = vmatprep.subr.mxu0 0.0
    %864 = vmatpush1.msra.mxu0 0.0
    %865 = vmatprep.subr.mxu0 0.0
    %866 = vmatpush1.msra.mxu0 0.0
    %867 = vmatprep.subr.mxu0 0.0
    %868 = vmatpush1.msra.mxu0 0.0
    %869 = vmatprep.subr.mxu0 0.0
    %870 = vmatpush1.msra.mxu0 0.0
    %871 = vmatprep.subr.mxu0 0.0
    %872 = vmatpush1.msra.mxu0 0.0
    %873 = vmatprep.subr.mxu0 0.0
    %874 = vmatpush1.msra.mxu0 0.0
    %875 = vmatprep.subr.mxu0 0.0
    %876 = vmatpush1.msra.mxu0 0.0
    %877 = vmatprep.subr.mxu0 0.0
    %878 = vmatpush1.msra.mxu0 0.0
    %879 = vmatprep.subr.mxu0 0.0
    %880 = vmatpush1.msra.mxu0 0.0
    %881 = vmatprep.subr.mxu0 0.0
    %882 = vmatpush1.msra.mxu0 0.0
    %883 = vmatprep.subr.mxu0 0.0
    %884 = vmatpush1.msra.mxu0 0.0
    %885 = vmatprep.subr.mxu0 0.0
    %886 = vmatpush1.msra.mxu0 0.0
    %887 = vmatprep.subr.mxu0 0.0
    %888 = vmatpush1.msra.mxu0 0.0
    %889 = vmatprep.subr.mxu0 0.0
    %890 = vmatpush1.msra.mxu0 0.0
    %891 = vmatprep.subr.mxu0 0.0
    %892 = vmatpush1.msra.mxu0 0.0
    %893 = vmatprep.subr.mxu0 0.0
    %894 = vmatpush1.msra.mxu0 0.0
    %895 = vmatprep.subr.mxu0 0.0
    %896 = vmatpush1.msra.mxu0 0.0
    %897 = vmatprep.subr.mxu0 0.0
    %898 = vmatpush1.msra.mxu0 0.0
    %899 = vmatprep.mubr.f32.mxu0 0.0
    %v900 = vand.u32 %v341, 4294901760
    %901 = vmatmul.mubr.f32.gmra.mrb[0].mxu0 %v900
    %v902 = vpop.f32.mrb[0].mxu0
    %v903 = vadd.f32 %v822, %v902
    %v904 = vpop.f32.mrb[0].mxu0
    %905 = vdwg.mxu0
    %906 = vxpose.xlu0.b32.start [1/16] %v903, 128
    %907 = vxpose.xlu0.b32.cont [2/16] 0.0, 128
    %908 = vxpose.xlu0.b32.cont [3/16] 0.0, 128
    %909 = vxpose.xlu0.b32.cont [4/16] 0.0, 128
    %910 = vxpose.xlu0.b32.cont [5/16] 0.0, 128
    %911 = vxpose.xlu0.b32.cont [6/16] 0.0, 128
    %912 = vxpose.xlu0.b32.cont [7/16] 0.0, 128
    %913 = vxpose.xlu0.b32.cont [8/16] 0.0, 128
    %914 = vxpose.xlu0.b32.cont [9/16] 0.0, 128
    %915 = vxpose.xlu0.b32.cont [10/16] 0.0, 128
    %916 = vxpose.xlu0.b32.cont [11/16] 0.0, 128
    %917 = vxpose.xlu0.b32.cont [12/16] 0.0, 128
    %918 = vxpose.xlu0.b32.cont [13/16] 0.0, 128
    %919 = vxpose.xlu0.b32.cont [14/16] 0.0, 128
    %920 = vxpose.xlu0.b32.cont [15/16] 0.0, 128
    %921 = vxpose.xlu0.b32.end [16/16] 0.0, 128
    %v922 = vpop.trf.xlu0
    %v923 = vpop.trf.xlu0
    %v924 = vpop.trf.xlu0
    %v925 = vpop.trf.xlu0
    %v926 = vpop.trf.xlu0
    %v927 = vpop.trf.xlu0
    %v928 = vpop.trf.xlu0
    %v929 = vpop.trf.xlu0
    %v930 = vpop.trf.xlu0
    %v931 = vpop.trf.xlu0
    %v932 = vpop.trf.xlu0
    %v933 = vpop.trf.xlu0
    %v934 = vpop.trf.xlu0
    %v935 = vpop.trf.xlu0
    %v936 = vpop.trf.xlu0
    %v937 = vpop.trf.xlu0
    %938 = vst.msk [vmem:[#allocation8] sm:$0xff] %vm318, %v922
    // Predicated region
    $region18: #{tpu_custom_call.1} parent=1 // pred_check
      _
    $region19: #{tpu_custom_call.1} parent=1 // pred_check_branch
      %940 = sbr.rel (0) target = $region21
    $region20: #{tpu_custom_call.1} parent=1 // pred_region
      %s942 = ssub.s32 128, 128
      %943 = vsyncadd [#allocation5], %s942
      %s945 = sshll.u32 [#allocation8], 4
      %s946 = int_to_ptr.vmem [resolvable:$true] %s945
      %948 = dma.vmem_to_hbm [thread:$0]  %s946, 128, %s2, [#allocation5]
    $region21: #{tpu_custom_call.1} parent=1 // pred_fallthru
      _
    // Predicated region
    $region22: #{tpu_custom_call.1} parent=1 // pred_check
      _
    $region23: #{tpu_custom_call.1} parent=1 // pred_check_branch
      %950 = sbr.rel (0) target = $region25
    $region24: #{tpu_custom_call.1} parent=1 // pred_region
      %951 = dma.done [#allocation5], 128
    $region25: #{tpu_custom_call.1} parent=1 // pred_fallthru
      _
    %952 = vsyncpa [#allocation4], 1
    %953 = vsyncpa [#allocation7], 1
    %954 = vsyncpa [#allocation5], 1

</llo_original>
